<compile_context>
chip_gen: v7x
topology: tpu7x:2x2x1
jax: 0.10.0
libtpu: 0.0.40
codegen_flags: <defaults>
</compile_context>

<pallas_src>
import math

import jax
import jax.numpy as jnp
from jax.experimental import pallas as pl
from jax.experimental.pallas import tpu as pltpu


def _pos_add_kernel(spatial_ref, zsin_ref, out_ref):
    """out[bt, c, s] = spatial[c, s] + zsin[bt, c, 0].

    spatial_ref : VMEM (C, THW)     f32  -- shared spatial sin/cos table tile
    zsin_ref    : VMEM (TBT, C, 1)  f32  -- precomputed temporal sin term
    out_ref     : VMEM (TBT, C, THW) f32
    """
    out_ref[...] = spatial_ref[...][None, :, :] + zsin_ref[...]


def _round_up(v, m):
    return (v + m - 1) // m * m


def _vmem_capacity_bytes():
    try:
        info = pltpu.get_tpu_info()
        for name in ("vmem_capacity_bytes", "vmem_size_bytes", "vmem_bytes"):
            cap = getattr(info, name, None)
            if cap:
                return int(cap)
    except Exception:
        pass
    return 64 << 20  # conservative fallback (v7x per-TensorCore VMEM)


def position_embedding_sine_3d(x, t_indices=None, *, num_pos_feats=64,
                               num_max_frames=128, temperature=10000,
                               scale=None):
    """JAX/Pallas equivalent of PositionEmbeddingSine3DArbitraryT.forward.

    x: (B, T, Cin, H, W)  (only the shape is used, like the reference module)
    t_indices: optional (B, T) or (T,) frame indices ("arbitrary T" support)
    returns: (B, T, 2*num_pos_feats, H, W) float32
    """
    if scale is None:
        scale = 2 * math.pi
    scale = float(scale)
    b, t, _, h, w = x.shape
    assert num_pos_feats % 2 == 0
    feats = num_pos_feats
    feats2 = 2 * feats
    hw = h * w
    bt = b * t
    eps = 1e-6
    half_pi = math.pi / 2.0

    # ---------- tiny grid-invariant precompute (shared across all (b, t)) ----
    # Reciprocal dim tables + per-channel phase offsets (cos(x) == sin(x+pi/2)).
    d = jnp.arange(feats, dtype=jnp.float32)
    inv_dim_t = 1.0 / (temperature ** (2.0 * jnp.floor(d / 2.0) / feats))
    off = jnp.where(d % 2 == 0, 0.0, half_pi).astype(jnp.float32)

    dz = jnp.arange(feats2, dtype=jnp.float32)
    inv_dim_tz = 1.0 / (temperature ** (2.0 * jnp.floor(dz / 2.0) / feats2))
    off_z = jnp.where(dz % 2 == 0, 0.0, half_pi).astype(jnp.float32)

    # Spatial sin/cos table in the final layout: (C, H*W).
    # Channels [0, F) come from y, [F, 2F) from x (== torch.cat((pos_y, pos_x))).
    # (cumsum of an all-ones mask is just arange(1, n+1) — folded analytically.)
    y_coord = jnp.arange(1, h + 1, dtype=jnp.float32) * (scale / (h + eps))
    x_coord = jnp.arange(1, w + 1, dtype=jnp.float32) * (scale / (w + eps))
    pos_y = jnp.sin(inv_dim_t[:, None, None] * y_coord[None, :, None]
                    + off[:, None, None])                       # (F, h, 1)
    pos_y = jnp.broadcast_to(pos_y, (feats, h, w))
    pos_x = jnp.sin(inv_dim_t[:, None, None] * x_coord[None, None, :]
                    + off[:, None, None])                       # (F, 1, w)
    pos_x = jnp.broadcast_to(pos_x, (feats, h, w))
    spatial = jnp.concatenate([pos_y, pos_x], axis=0).reshape(feats2, hw)

    # Temporal sin term, precomputed in the wrapper (no EUP work per grid step).
    if t_indices is None:
        t_indices = jnp.broadcast_to(
            jnp.arange(t, dtype=jnp.float32)[None, :], (b, t))
    t_indices = jnp.asarray(t_indices)
    if t_indices.ndim == 1:
        t_indices = jnp.broadcast_to(t_indices[None, :], (b, t))
    z_norm = (t_indices.astype(jnp.float32) / num_max_frames * scale).reshape(bt)
    zsin = jnp.sin(z_norm[:, None] * inv_dim_tz[None, :]
                   + off_z[None, :])[:, :, None]                 # (bt, C, 1)
    # TODO(synk): the trailing size-1 dim is lane-padded in HBM/VMEM; a dense
    # (bt, C) operand would need an in-kernel lane->sublane relayout whose
    # Mosaic lowering is not guaranteed, so the proven (bt, C, 1) layout is
    # kept (overhead ~128/HW of the write traffic — negligible for real maps).

    # ---------- tiling --------------------------------------------------------
    itemsize = 4
    f2p = _round_up(feats2, 8)        # padded sublane extent
    hwp = _round_up(hw, 128)          # padded lane extent

    vmem_cap = _vmem_capacity_bytes()
    # 3/4 of physical VMEM, capped at 96 MiB (v5e/v6e: 96, v7x: 48).
    vmem_limit = int(min(max(vmem_cap * 3 // 4, 32 << 20), 96 << 20))
    budget = vmem_limit - (2 << 20)          # slack for misc / descriptors
    target_out = 8 << 20                     # ~8 MiB output per grid step

    spatial_buf = f2p * hwp * itemsize       # one buffer of the full table
    zsin_per_bt = f2p * 128 * itemsize       # padded per-(b,t) temporal slab
    full_slab = f2p * hwp * itemsize         # one (b,t) output slab (full hw)

    # Keep the whole spatial table resident whenever it (double-buffered) plus
    # at least one double-buffered (b,t) output slab fits the VMEM budget.
    full_spatial = (2 * spatial_buf + 2 * (full_slab + zsin_per_bt)) <= budget

    if full_spatial:
        thw = hw
        per_bt = full_slab + zsin_per_bt
        avail = (budget - 2 * spatial_buf) // 2
        tbt = max(1, min(bt, min(target_out, avail) // per_bt))
    else:
        # hw must be tiled: thw is a multiple of 128, preferring an exact
        # divisor of hw so every j-block gets lane-dense unmasked stores.
        max_thw = min(hw,
                      (budget // 2 - zsin_per_bt) // (2 * f2p * itemsize),
                      target_out // (f2p * itemsize))
        max_thw = max(128, (max_thw // 128) * 128)
        thw = None
        c = max_thw
        while c >= 128:
            if hw % c == 0:
                thw = c
                break
            c -= 128
        if thw is None:
            thw = max_thw
        per_bt = f2p * thw * itemsize + zsin_per_bt
        avail = (budget - 2 * f2p * thw * itemsize) // 2
        tbt = max(1, min(bt, min(target_out, avail) // per_bt))

    # v7x megacore: ensure the bt axis has >= 2 blocks when there is work to
    # split across the 2 TensorCores (harmless on single-TC v5e/v6e).
    if bt >= 2 and pl.cdiv(bt, tbt) < 2:
        tbt = pl.cdiv(bt, 2)
    n_bt = pl.cdiv(bt, tbt)

    if full_spatial:
        # Single-axis grid over bt: spatial block index is constant across the
        # whole grid -> the table is DMA'd from HBM exactly once.
        grid = (n_bt,)
        in_specs = [
            pl.BlockSpec((feats2, hw), lambda i: (0, 0)),
            pl.BlockSpec((tbt, feats2, 1), lambda i: (i, 0, 0)),
        ]
        out_specs = pl.BlockSpec((tbt, feats2, hw), lambda i: (i, 0, 0))
        dims = ("parallel",)
    else:
        # hw tiles on the OUTER axis, bt on the INNER axis: the spatial block
        # index only depends on the outer axis, so it stays constant across
        # the inner bt steps and each spatial tile is fetched exactly once.
        n_hw = pl.cdiv(hw, thw)
        grid = (n_hw, n_bt)
        in_specs = [
            pl.BlockSpec((feats2, thw), lambda j, i: (0, j)),
            pl.BlockSpec((tbt, feats2, 1), lambda j, i: (i, 0, 0)),
        ]
        out_specs = pl.BlockSpec((tbt, feats2, thw), lambda j, i: (i, 0, j))
        dims = ("parallel", "parallel")

    out = pl.pallas_call(
        _pos_add_kernel,
        out_shape=jax.ShapeDtypeStruct((bt, feats2, hw), jnp.float32),
        grid=grid,
        in_specs=in_specs,
        out_specs=out_specs,
        compiler_params=pltpu.CompilerParams(
            dimension_semantics=dims,
            vmem_limit_bytes=vmem_limit),
    )(spatial, zsin)

    # (B*T, C, H*W) -> (B, T, C, H, W): contiguous metadata reshape, no transpose.
    return out.reshape(b, t, feats2, h, w)


def _reference_jax(x, t_indices, num_pos_feats, num_max_frames, temperature, scale):
    """Pure-JAX transcription of the PyTorch forward() for verification."""
    b, t, _, h, w = x.shape
    if t_indices is None:
        t_indices = jnp.broadcast_to(jnp.arange(t)[None, :], (b, t))
    z_embed = jnp.broadcast_to(
        t_indices[:, :, None, None].astype(jnp.float32), (b, t, h, w))
    not_mask = jnp.ones((b, t, h, w), jnp.float32)
    y_embed = jnp.cumsum(not_mask, axis=2)
    x_embed = jnp.cumsum(not_mask, axis=3)
    eps = 1e-6
    z_embed = z_embed / num_max_frames * scale
    y_embed = y_embed / (y_embed[:, :, -1:, :] + eps) * scale
    x_embed = x_embed / (x_embed[:, :, :, -1:] + eps) * scale
    d = jnp.arange(num_pos_feats, dtype=jnp.float32)
    dim_t = temperature ** (2.0 * jnp.floor(d / 2.0) / num_pos_feats)
    dz = jnp.arange(num_pos_feats * 2, dtype=jnp.float32)
    dim_t_z = temperature ** (2.0 * jnp.floor(dz / 2.0) / (num_pos_feats * 2))
    pos_x = x_embed[..., None] / dim_t
    pos_y = y_embed[..., None] / dim_t
    pos_z = z_embed[..., None] / dim_t_z

    def interleave(p):
        s = jnp.stack([jnp.sin(p[..., 0::2]), jnp.cos(p[..., 1::2])], axis=-1)
        return s.reshape(p.shape[:-1] + (p.shape[-1],))

    pos_x, pos_y, pos_z = interleave(pos_x), interleave(pos_y), interleave(pos_z)
    pos = jnp.concatenate([pos_y, pos_x], axis=-1) + pos_z
    return pos.transpose(0, 1, 4, 2, 3)


if __name__ == "__main__":
    NUM_MAX_FRAMES = 128
    TEMPERATURE = 10000
    SCALE = 2 * math.pi
    F = 16                      # num_pos_feats -> 32 output channels

    key = jax.random.PRNGKey(0)
    k1, k2 = jax.random.split(key)

    # Case 1: default t_indices, small video batch (aligned-ish shapes).
    B, T, Cin, H, W = 2, 4, 4, 8, 16
    x1 = jax.random.normal(k1, (B, T, Cin, H, W), dtype=jnp.float32)
    pos1 = jax.block_until_ready(position_embedding_sine_3d(
        x1, num_pos_feats=F, num_max_frames=NUM_MAX_FRAMES,
        temperature=TEMPERATURE, scale=SCALE))
    ref1 = _reference_jax(x1, None, F, NUM_MAX_FRAMES, TEMPERATURE, SCALE)
    assert pos1.shape == (B, T, 2 * F, H, W), pos1.shape
    assert pos1.dtype == jnp.float32
    assert jnp.allclose(pos1, ref1, rtol=1e-3, atol=1e-3), (
        float(jnp.max(jnp.abs(pos1 - ref1))))

    # Case 2: arbitrary t_indices + ragged shapes (odd B*T, H*W not a multiple
    # of 128) — exercises partial-block write masking and the custom-T path.
    B2, T2, Cin2, H2, W2 = 3, 5, 2, 7, 9
    x2 = jax.random.normal(k2, (B2, T2, Cin2, H2, W2), dtype=jnp.float32)
    ti = jax.random.randint(jax.random.PRNGKey(7), (B2, T2), 0, NUM_MAX_FRAMES)
    pos2 = jax.block_until_ready(position_embedding_sine_3d(
        x2, t_indices=ti, num_pos_feats=F, num_max_frames=NUM_MAX_FRAMES,
        temperature=TEMPERATURE, scale=SCALE))
    ref2 = _reference_jax(x2, ti, F, NUM_MAX_FRAMES, TEMPERATURE, SCALE)
    assert pos2.shape == (B2, T2, 2 * F, H2, W2), pos2.shape
    assert jnp.allclose(pos2, ref2, rtol=1e-3, atol=1e-3), (
        float(jnp.max(jnp.abs(pos2 - ref2))))

    print("KERNEL_OK")
</pallas_src>

<mosaic_0001>
module attributes {stable_mosaic.version = 11 : i64} {
  func.func @_pos_add_kernel(%arg0: i32, %arg1: memref<32x128xf32, #tpu.memory_space<vmem>>, %arg2: memref<4x32x1xf32, #tpu.memory_space<vmem>>, %arg3: memref<4x32x128xf32, #tpu.memory_space<vmem>>) attributes {dimension_semantics = [#tpu.dimension_semantics<parallel>], iteration_bounds = array<i64: 2>, scalar_prefetch = 0 : i64, scratch_operands = 0 : i64, tpu.core_type = #tpu.core_type<tc>, window_params = [{pipeline_mode = #tpu.pipeline_mode<synchronous>, transform_indices = @transform_0, window_bounds = array<i64: 32, 128>}, {transform_indices = @transform_1, window_bounds = array<i64: 4, 32, 1>}, {transform_indices = @transform_2, window_bounds = array<i64: 4, 32, 128>}]} {
    %c0 = arith.constant 0 : index
    %c0_0 = arith.constant 0 : index
    %0 = vector.load %arg1[%c0, %c0_0] : memref<32x128xf32, #tpu.memory_space<vmem>>, vector<32x128xf32>
    %1 = vector.shape_cast %0 : vector<32x128xf32> to vector<1x32x128xf32>
    %c0_1 = arith.constant 0 : index
    %c0_2 = arith.constant 0 : index
    %c0_3 = arith.constant 0 : index
    %2 = vector.load %arg2[%c0_1, %c0_2, %c0_3] : memref<4x32x1xf32, #tpu.memory_space<vmem>>, vector<4x32x1xf32>
    %3 = vector.broadcast %1 : vector<1x32x128xf32> to vector<4x32x128xf32>
    %4 = vector.broadcast %2 : vector<4x32x1xf32> to vector<4x32x128xf32>
    %5 = arith.addf %3, %4 : vector<4x32x128xf32>
    %c0_4 = arith.constant 0 : index
    %c0_5 = arith.constant 0 : index
    %c0_6 = arith.constant 0 : index
    %6 = vector.load %arg3[%c0_4, %c0_5, %c0_6] : memref<4x32x128xf32, #tpu.memory_space<vmem>>, vector<4x32x128xf32>
    tpu.vector_store %arg3[%c0_4, %c0_5, %c0_6], %5 {strides = array<i32>} : memref<4x32x128xf32, #tpu.memory_space<vmem>>, vector<4x32x128xf32>,
    return
  }
  func.func @transform_0(%arg0: i32) -> (i32, i32) {
    %c0_i32 = arith.constant 0 : i32
    %c0_i32_0 = arith.constant 0 : i32
    %c0_i32_1 = arith.constant 0 : i32
    return %c0_i32, %c0_i32_0 : i32, i32
  }
  func.func @transform_1(%arg0: i32) -> (i32, i32, i32) {
    %c0_i32 = arith.constant 0 : i32
    %c0_i32_0 = arith.constant 0 : i32
    %c0_i32_1 = arith.constant 0 : i32
    return %arg0, %c0_i32, %c0_i32_0 : i32, i32, i32
  }
  func.func @transform_2(%arg0: i32) -> (i32, i32, i32) {
    %c0_i32 = arith.constant 0 : i32
    %c0_i32_0 = arith.constant 0 : i32
    %c0_i32_1 = arith.constant 0 : i32
    return %arg0, %c0_i32, %c0_i32_0 : i32, i32, i32
  }
}

</mosaic_0001>

<llo_original>
// kernel: tpu_custom_call.1
$region0: #{tpu_custom_call.1}
  #allocation0 [shape = 'u32[]', space=smem, size = 0x4, offset = 0x4, fixed_abs, tag = 'smem constant byte address 0x4 - core index']
  #allocation1 [shape = 'u32[144,128]{1,0:T(1,128)}', space=vmem, size = 0x12000, scoped, tag = 'internal scratch']
  %s0 = inlined_call_operand.vmem [shape: f32[32,128], index: 0, kind: input, shape index: {}]
  %s1 = inlined_call_operand.vmem [shape: f32[8,32,1], index: 1, kind: input, shape index: {}]
  %s2 = inlined_call_operand.hbm [shape: f32[8,32,128], index: 2, kind: output, shape index: {}]
  %s3 = sld [smem:[#allocation0]]
  $region41: #{tpu_custom_call.1} parent=0
    _
  %s5 = ssub.s32 1, %s3
  %s6 = scalar_select 0, %s5, %s3
  $region1: #{tpu_custom_call.1} parent=0
    #allocation2 [shape = 'u8[131072]{0}', space=vmem, size = 0x20000, scoped, tag = 'output window, operand 0']
    #allocation3 [shape = 's32[2]{0}', space=sflag, size = 0x8, scoped, tag = 'scoped memory for tpu_custom_call.1']
    %7 = vsyncpa [#allocation3], 0
    %s8 = scalar_lea.sflag [#allocation3], 1
    %9 = vsyncpa %s8, 0
    loop: start=0, step=1, limit=4
    $region2: #{tpu_custom_call.1} parent=1 // loop_pre_header
      _
    $region3: #{tpu_custom_call.1} parent=1 // loop_header
      %s11 = sphi 0, %s15
      %p12 = scmp.ge.s32.totalorder %s11, 4
      %s19 = sphi 0, %s19
      %s21 = sphi 0, %s19
      %s22 = sphi 0, %s21
      %s36 = sphi 0, %s22
      %s42 = sphi 0, %s44
      %s45 = sphi 0, %s42
      %s46 = sphi 0, %s45
      %s62 = sphi 0, %s46
      %s68 = sphi 0, %s70
      %s71 = sphi 0, %s68
      %s72 = sphi 0, %s71
      %s88 = sphi 0, %s72
    $region4: #{tpu_custom_call.1} parent=1 // loop_header_branch
      %14 = sbr.rel (%p12) target = $region8
    $region5: #{tpu_custom_call.1} parent=1 // loop_body
      %s16 = ssub.s32 %s11, 1
      %s17 = ssub.s32 %s11, 2
      %s18 = sadd.s32 %s11, 1
      %s20 = sadd.s32 %s19, 1
      %p23 = scmp.eq.s32.totalorder %s11, 1
      %p24 = scmp.ne.s32.totalorder %s19, %s21
      %p25 = scmp.eq.s32.totalorder %s11, 0
      %p26 = por %p24, %p25
      %p27 = scmp.ne.s32.totalorder %s19, %s21
      %p28 = scmp.eq.s32.totalorder %s16, 1
      %p29 = por %p27, %p28
      %p30 = scmp.ne.s32.totalorder %s21, %s22
      %p31 = scmp.eq.s32.totalorder %s16, 0
      %p32 = por %p30, %p31
      %p33 = scmp.ne.s32.totalorder %s21, %s22
      %p34 = scmp.eq.s32.totalorder %s17, 1
      %p35 = por %p33, %p34
      %p37 = scmp.ne.s32.totalorder %s22, %s36
      %p38 = scmp.eq.s32.totalorder %s17, 0
      %p39 = por %p37, %p38
      %s40 = ssub.s32 %s11, %s18
      %p41 = scmp.eq.s32.totalorder %s40, 0
      %s43 = sadd.s32 %s42, 1
      %s44 = scalar_select %p41, %s42, %s43
      %p47 = pneg %p41
      %p48 = scmp.eq.s32.totalorder %s11, 1
      %p49 = por %p47, %p48
      %p50 = scmp.ne.s32.totalorder %s42, %s45
      %p51 = scmp.eq.s32.totalorder %s11, 0
      %p52 = por %p50, %p51
      %p53 = scmp.ne.s32.totalorder %s42, %s45
      %p54 = scmp.eq.s32.totalorder %s16, 1
      %p55 = por %p53, %p54
      %p56 = scmp.ne.s32.totalorder %s45, %s46
      %p57 = scmp.eq.s32.totalorder %s16, 0
      %p58 = por %p56, %p57
      %p59 = scmp.ne.s32.totalorder %s45, %s46
      %p60 = scmp.eq.s32.totalorder %s17, 1
      %p61 = por %p59, %p60
      %p63 = scmp.ne.s32.totalorder %s46, %s62
      %p64 = scmp.eq.s32.totalorder %s17, 0
      %p65 = por %p63, %p64
      %s66 = ssub.s32 %s11, %s18
      %p67 = scmp.eq.s32.totalorder %s66, 0
      %s69 = sadd.s32 %s68, 1
      %s70 = scalar_select %p67, %s68, %s69
      %p73 = pneg %p67
      %p74 = scmp.eq.s32.totalorder %s11, 1
      %p75 = por %p73, %p74
      %p76 = scmp.ne.s32.totalorder %s68, %s71
      %p77 = scmp.eq.s32.totalorder %s11, 0
      %p78 = por %p76, %p77
      %p79 = scmp.ne.s32.totalorder %s68, %s71
      %p80 = scmp.eq.s32.totalorder %s16, 1
      %p81 = por %p79, %p80
      %p82 = scmp.ne.s32.totalorder %s71, %s72
      %p83 = scmp.eq.s32.totalorder %s16, 0
      %p84 = por %p82, %p83
      %p85 = scmp.ne.s32.totalorder %s71, %s72
      %p86 = scmp.eq.s32.totalorder %s17, 1
      %p87 = por %p85, %p86
      %p89 = scmp.ne.s32.totalorder %s72, %s88
      %p90 = scmp.eq.s32.totalorder %s17, 0
      %p91 = por %p89, %p90
      %p92 = scmp.le.s32.totalorder 1, %s11
      %p93 = scmp.lt.s32.totalorder %s11, 3
      %p94 = pnand %p92, %p93
      %p95 = pneg %p94
      // Predicated region
      $region9: #{tpu_custom_call.1} parent=5 // pred_check
        _
      $region10: #{tpu_custom_call.1} parent=5 // pred_check_branch
        %97 = sbr.rel (%p94) target = $region12
      $region11: #{tpu_custom_call.1} parent=5 // pred_region
        %s98 = ssub.s32 %s11, 1
        // Predicated region
        $region13: #{tpu_custom_call.1} parent=11 // pred_check
          %p99 = pneg %p32
        $region14: #{tpu_custom_call.1} parent=11 // pred_check_branch
          %101 = sbr.rel (%p99) target = $region16
        $region15: #{tpu_custom_call.1} parent=11 // pred_region
          _
        $region16: #{tpu_custom_call.1} parent=11 // pred_fallthru
          _
      $region12: #{tpu_custom_call.1} parent=5 // pred_fallthru
        _
      %p102 = scmp.lt.s32.totalorder %s11, 2
      // Predicated region
      $region17: #{tpu_custom_call.1} parent=5 // pred_check
        %p103 = pneg %p102
      $region18: #{tpu_custom_call.1} parent=5 // pred_check_branch
        %105 = sbr.rel (%p103) target = $region20
      $region19: #{tpu_custom_call.1} parent=5 // pred_region
        // Predicated region
        $region21: #{tpu_custom_call.1} parent=19 // pred_check
          %p106 = pneg %p52
        $region22: #{tpu_custom_call.1} parent=19 // pred_check_branch
          %108 = sbr.rel (%p106) target = $region24
        $region23: #{tpu_custom_call.1} parent=19 // pred_region
          %s109 = smul.u32 4, %s11
          %p110 = scmp.lt.s32.totalorder %s109, 7
          %s111 = scalar_select %p110, %s109, 7
          %s112 = smul.addr %s111, 4
          %s113 = smul.addr %s112, 8
          %s114 = scalar_lea.vmem %s1, %s113
          %s115 = smul.u32 4, %s11
        $region24: #{tpu_custom_call.1} parent=19 // pred_fallthru
          _
      $region20: #{tpu_custom_call.1} parent=5 // pred_fallthru
        _
      %p116 = scmp.le.s32.totalorder 1, %s11
      %p117 = scmp.lt.s32.totalorder %s11, 3
      %p118 = pnand %p116, %p117
      %p119 = pneg %p118
      // Predicated region
      $region25: #{tpu_custom_call.1} parent=5 // pred_check
        _
      $region26: #{tpu_custom_call.1} parent=5 // pred_check_branch
        %121 = sbr.rel (%p118) target = $region28
      $region27: #{tpu_custom_call.1} parent=5 // pred_region
        %s122 = ssub.s32 %s11, 1
        %p123 = pneg %p32
        %p124 = pneg %p29
        %s125 = smul.u32 4, %s16
        %p126 = scmp.lt.s32.totalorder %s125, 7
        %s127 = scalar_select %p126, %s125, 7
        %s128 = smul.addr %s127, 4
        %s129 = smul.addr %s128, 8
        %s130 = scalar_lea.vmem %s1, %s129
        %p131 = pneg %p58
        %p132 = pneg %p55
        %p133 = pneg %p84
        %p134 = pneg %p81
        %s135 = sand.u32 %s71, 1
        %s136 = scalar_lea.sflag [#allocation3], %s135
        %s137 = sand.u32 %s71, 1
        %s138 = smul.addr %s137, 128
        %s139 = scalar_lea.vmem [#allocation2], %s138
        %s140 = smul.u32 4, %s16
        %p141 = scmp.lt.s32.totalorder %s140, 7
        %s142 = scalar_select %p141, %s140, 7
        %s143 = smul.addr %s142, 4
        %s144 = smul.addr %s143, 8
        %s145 = scalar_lea.vmem %s1, %s144
        %s146 = smul.u32 4, %s16
        %s147 = smul.u32 4, %s16
        %v148 = vld [vmem:[%s0] sm:$0xff]
        %v149 = vld [vmem:[%s0 + $0x8] sm:$0xff]
        %v150 = vld [vmem:[%s0 + $0x10] sm:$0xff]
        %v151 = vld [vmem:[%s0 + $0x18] sm:$0xff]
        %v152 = vld [vmem:[%s145] sm:$0xff]
        %v153 = vld [vmem:[%s145 + $0x8] sm:$0xff]
        %v154 = vld [vmem:[%s145 + $0x10] sm:$0xff]
        %v155 = vld [vmem:[%s145 + $0x18] sm:$0xff]
        %v156 = vld [vmem:[%s145 + $0x20] sm:$0xff]
        %v157 = vld [vmem:[%s145 + $0x28] sm:$0xff]
        %v158 = vld [vmem:[%s145 + $0x30] sm:$0xff]
        %v159 = vld [vmem:[%s145 + $0x38] sm:$0xff]
        %v160 = vld [vmem:[%s145 + $0x40] sm:$0xff]
        %v161 = vld [vmem:[%s145 + $0x48] sm:$0xff]
        %v162 = vld [vmem:[%s145 + $0x50] sm:$0xff]
        %v163 = vld [vmem:[%s145 + $0x58] sm:$0xff]
        %v164 = vld [vmem:[%s145 + $0x60] sm:$0xff]
        %v165 = vld [vmem:[%s145 + $0x68] sm:$0xff]
        %v166 = vld [vmem:[%s145 + $0x70] sm:$0xff]
        %v167 = vld [vmem:[%s145 + $0x78] sm:$0xff]
        %169 = vset.pattern.permute.xlu0 0
        %170 = vperm.xlu0 %169, %v152
        %v171 = vpop.permute.xlu0 %170
        %174 = vset.pattern.permute.xlu0 0
        %175 = vperm.xlu0 %174, %v153
        %v176 = vpop.permute.xlu0 %175
        %179 = vset.pattern.permute.xlu0 0
        %180 = vperm.xlu0 %179, %v154
        %v181 = vpop.permute.xlu0 %180
        %184 = vset.pattern.permute.xlu0 0
        %185 = vperm.xlu0 %184, %v155
        %v186 = vpop.permute.xlu0 %185
        %189 = vset.pattern.permute.xlu0 0
        %190 = vperm.xlu0 %189, %v156
        %v191 = vpop.permute.xlu0 %190
        %194 = vset.pattern.permute.xlu0 0
        %195 = vperm.xlu0 %194, %v157
        %v196 = vpop.permute.xlu0 %195
        %199 = vset.pattern.permute.xlu0 0
        %200 = vperm.xlu0 %199, %v158
        %v201 = vpop.permute.xlu0 %200
        %204 = vset.pattern.permute.xlu0 0
        %205 = vperm.xlu0 %204, %v159
        %v206 = vpop.permute.xlu0 %205
        %209 = vset.pattern.permute.xlu0 0
        %210 = vperm.xlu0 %209, %v160
        %v211 = vpop.permute.xlu0 %210
        %214 = vset.pattern.permute.xlu0 0
        %215 = vperm.xlu0 %214, %v161
        %v216 = vpop.permute.xlu0 %215
        %219 = vset.pattern.permute.xlu0 0
        %220 = vperm.xlu0 %219, %v162
        %v221 = vpop.permute.xlu0 %220
        %224 = vset.pattern.permute.xlu0 0
        %225 = vperm.xlu0 %224, %v163
        %v226 = vpop.permute.xlu0 %225
        %229 = vset.pattern.permute.xlu0 0
        %230 = vperm.xlu0 %229, %v164
        %v231 = vpop.permute.xlu0 %230
        %234 = vset.pattern.permute.xlu0 0
        %235 = vperm.xlu0 %234, %v165
        %v236 = vpop.permute.xlu0 %235
        %239 = vset.pattern.permute.xlu0 0
        %240 = vperm.xlu0 %239, %v166
        %v241 = vpop.permute.xlu0 %240
        %244 = vset.pattern.permute.xlu0 0
        %245 = vperm.xlu0 %244, %v167
        %v246 = vpop.permute.xlu0 %245
        %v248 = vadd.f32 %v148, %v171
        %v249 = vadd.f32 %v149, %v176
        %v250 = vadd.f32 %v150, %v181
        %v251 = vadd.f32 %v151, %v186
        %v252 = vadd.f32 %v148, %v191
        %v253 = vadd.f32 %v149, %v196
        %v254 = vadd.f32 %v150, %v201
        %v255 = vadd.f32 %v151, %v206
        %v256 = vadd.f32 %v148, %v211
        %v257 = vadd.f32 %v149, %v216
        %v258 = vadd.f32 %v150, %v221
        %v259 = vadd.f32 %v151, %v226
        %v260 = vadd.f32 %v148, %v231
        %v261 = vadd.f32 %v149, %v236
        %v262 = vadd.f32 %v150, %v241
        %v263 = vadd.f32 %v151, %v246
        %264 = vst [vmem:[%s139] sm:$0xff] %v248
        %265 = vst [vmem:[%s139 + $0x8] sm:$0xff] %v249
        %266 = vst [vmem:[%s139 + $0x10] sm:$0xff] %v250
        %267 = vst [vmem:[%s139 + $0x18] sm:$0xff] %v251
        %268 = vst [vmem:[%s139 + $0x20] sm:$0xff] %v252
        %269 = vst [vmem:[%s139 + $0x28] sm:$0xff] %v253
        %270 = vst [vmem:[%s139 + $0x30] sm:$0xff] %v254
        %271 = vst [vmem:[%s139 + $0x38] sm:$0xff] %v255
        %272 = vst [vmem:[%s139 + $0x40] sm:$0xff] %v256
        %273 = vst [vmem:[%s139 + $0x48] sm:$0xff] %v257
        %274 = vst [vmem:[%s139 + $0x50] sm:$0xff] %v258
        %275 = vst [vmem:[%s139 + $0x58] sm:$0xff] %v259
        %276 = vst [vmem:[%s139 + $0x60] sm:$0xff] %v260
        %277 = vst [vmem:[%s139 + $0x68] sm:$0xff] %v261
        %278 = vst [vmem:[%s139 + $0x70] sm:$0xff] %v262
        %279 = vst [vmem:[%s139 + $0x78] sm:$0xff] %v263
        %s280 = sand.u32 %s71, 1
        %s281 = scalar_lea.sflag [#allocation3], %s280
        %s282 = sand.u32 %s71, 1
        %s283 = smul.addr %s282, 128
        %s284 = scalar_lea.vmem [#allocation2], %s283
        // Predicated region
        $region29: #{tpu_custom_call.1} parent=27 // pred_check
          %p285 = pneg %p81
        $region30: #{tpu_custom_call.1} parent=27 // pred_check_branch
          %287 = sbr.rel (%p285) target = $region32
        $region31: #{tpu_custom_call.1} parent=27 // pred_region
          %s288 = smul.u32 4, %s16
          %s290 = ssub.s32 2048, 2048
          %291 = vsyncadd %s281, %s290
          %s292 = smul.addr %s288, 4
          %s293 = smul.addr %s292, 128
          %s294 = scalar_lea.hbm %s2, %s293
          %s295 = sshll.u32 %s284, 4
          %s296 = int_to_ptr.vmem [resolvable:$true] %s295
          %301 = dma.vmem_to_hbm [thread:$0]  %s296, 2048, %s294, %s281, 128, 128, 8
        $region32: #{tpu_custom_call.1} parent=27 // pred_fallthru
          _
      $region28: #{tpu_custom_call.1} parent=5 // pred_fallthru
        _
      %p302 = scmp.le.s32.totalorder 2, %s11
      // Predicated region
      $region33: #{tpu_custom_call.1} parent=5 // pred_check
        %p303 = pneg %p302
      $region34: #{tpu_custom_call.1} parent=5 // pred_check_branch
        %305 = sbr.rel (%p303) target = $region36
      $region35: #{tpu_custom_call.1} parent=5 // pred_region
        %s306 = ssub.s32 %s11, 2
        // Predicated region
        $region37: #{tpu_custom_call.1} parent=35 // pred_check
          %p307 = pneg %p87
        $region38: #{tpu_custom_call.1} parent=35 // pred_check_branch
          %309 = sbr.rel (%p307) target = $region40
        $region39: #{tpu_custom_call.1} parent=35 // pred_region
          %s310 = sand.u32 %s72, 1
          %s311 = scalar_lea.sflag [#allocation3], %s310
          %s312 = sand.u32 %s72, 1
          %s313 = smul.addr %s312, 128
          %s314 = scalar_lea.vmem [#allocation2], %s313
          %315 = dma.done %s311, 2048
        $region40: #{tpu_custom_call.1} parent=35 // pred_fallthru
          _
      $region36: #{tpu_custom_call.1} parent=5 // pred_fallthru
        _
    $region6: #{tpu_custom_call.1} parent=1 // loop_footer
      %s15 = sadd.s32 1, %s11
    $region7: #{tpu_custom_call.1} parent=1 // loop_footer_branch
      %10 = sbr.rel target = $region3
    $region8: #{tpu_custom_call.1} parent=1 // loop_exit
      _
    %316 = vsyncpa [#allocation3], 1
    %s317 = scalar_lea.sflag [#allocation3], 1
    %318 = vsyncpa %s317, 1

</llo_original>
